<compile_context>
chip_gen: v6e
topology: v6e:2x2x1
jax: 0.10.0
libtpu: 0.0.40
codegen_flags: <defaults>
</compile_context>

<pallas_src>
import functools
import math

import jax
import jax.numpy as jnp
from jax.experimental import pallas as pl
from jax.experimental.pallas import tpu as pltpu


# ----------------------------- helpers --------------------------------------

def _pick_tile(dim, candidates):
    for c in candidates:
        if dim % c == 0:
            return c
    return dim


# ----------------------- tiled 1x1 conv (+BN +ReLU) --------------------------

def _mm_affine_kernel(x_ref, w_ref, s_ref, b_ref, o_ref, acc_ref, *, relu):
    # y = act((x @ w) * s + b)  with f32 accumulation over the K grid axis.
    @pl.when(pl.program_id(2) == 0)
    def _():
        acc_ref[...] = jnp.zeros_like(acc_ref)

    acc_ref[...] += jnp.dot(x_ref[...], w_ref[...],
                            preferred_element_type=jnp.float32)

    @pl.when(pl.program_id(2) == pl.num_programs(2) - 1)
    def _():
        y = acc_ref[...] * s_ref[...] + b_ref[...]
        if relu:
            y = jnp.maximum(y, 0.0)
        o_ref[...] = y.astype(o_ref.dtype)


def mm_affine(x, w, s, b, relu=True):
    """(M,K)bf16 @ (K,N)bf16 -> bf16, fused folded-BN affine + ReLU (f32 epilogue)."""
    M, K = x.shape
    N = w.shape[1]
    TM = _pick_tile(M, (256, 512, 128, 64, 32, 16, 8))
    TN = _pick_tile(N, (256, 512, 128))
    TK = _pick_tile(K, (512, 256, 128))
    grid = (M // TM, N // TN, K // TK)
    kernel = functools.partial(_mm_affine_kernel, relu=relu)
    return pl.pallas_call(
        kernel,
        out_shape=jax.ShapeDtypeStruct((M, N), jnp.bfloat16),
        grid=grid,
        in_specs=[
            pl.BlockSpec((TM, TK), lambda i, j, k: (i, k)),
            pl.BlockSpec((TK, TN), lambda i, j, k: (k, j)),
            pl.BlockSpec((1, TN), lambda i, j, k: (0, j)),
            pl.BlockSpec((1, TN), lambda i, j, k: (0, j)),
        ],
        out_specs=pl.BlockSpec((TM, TN), lambda i, j, k: (i, j)),
        scratch_shapes=[pltpu.VMEM((TM, TN), jnp.float32)],
        compiler_params=pltpu.CompilerParams(
            dimension_semantics=("parallel", "parallel", "arbitrary")),
    )(x, w, s, b)


# ------------------ stride-2 1x1 conv (+BN +ReLU), fused subsample -----------

def _conv1x1_s2_kernel(x_ref, w_ref, s_ref, b_ref, o_ref):
    Cin = w_ref.shape[0]
    row = x_ref[0, 0]                 # (Wo, 2*Cin): even row, adjacent pixel pairs
    xe = row[:, :Cin]                 # even columns only (lane slice)
    y = jnp.dot(xe, w_ref[...], preferred_element_type=jnp.float32)
    y = jnp.maximum(y * s_ref[...] + b_ref[...], 0.0)
    o_ref[0] = y.astype(o_ref.dtype)


def conv1x1_stride2(x_nhwc, w, s, b):
    """1x1 conv with stride 2 + folded BN + ReLU; subsampling folded into the kernel."""
    B, H, W, Cin = x_nhwc.shape
    Ho, Wo = H // 2, W // 2
    Cout = w.shape[1]
    # Free (contiguous) reshape: row pairs on axis 1, pixel pairs merged into lanes.
    xr = x_nhwc.reshape(B * Ho, 2, Wo, 2 * Cin)
    out = pl.pallas_call(
        _conv1x1_s2_kernel,
        out_shape=jax.ShapeDtypeStruct((B * Ho, Wo, Cout), jnp.bfloat16),
        grid=(B * Ho,),
        in_specs=[
            pl.BlockSpec((1, 1, Wo, 2 * Cin), lambda g: (g, 0, 0, 0)),
            pl.BlockSpec((Cin, Cout), lambda g: (0, 0)),
            pl.BlockSpec((1, Cout), lambda g: (0, 0)),
            pl.BlockSpec((1, Cout), lambda g: (0, 0)),
        ],
        out_specs=pl.BlockSpec((1, Wo, Cout), lambda g: (g, 0, 0)),
        compiler_params=pltpu.CompilerParams(dimension_semantics=("parallel",)),
    )(xr, w, s, b)
    return out.reshape(B, Ho, Wo, Cout)


# -------------- 3x3 conv + BN + ReLU + fused global max pool -----------------

def _conv3x3_pool_kernel(xp_ref, w_ref, s_ref, b_ref, o_ref, *, H, W, TH):
    # xp_ref: (1, (H+4)*(W+2), Cin) -- zero-padded activation, rows flattened.
    # For output-row chunk h0 and tap (kh,kw), a contiguous slice of TH*(W+2)
    # rows gives the shifted view; the 2 wrapped columns per row are masked out
    # of the global max (post-ReLU values are >= 0, so masking to 0 is exact).
    Wp = W + 2
    Cout = w_ref.shape[-1]
    s = s_ref[...]
    b = b_ref[...]
    col = jax.lax.broadcasted_iota(jnp.int32, (TH * Wp, 1), 0) % Wp
    valid = col < W
    run_max = jnp.zeros((1, Cout), jnp.float32)
    for h0 in range(0, H, TH):
        acc = jnp.zeros((TH * Wp, Cout), jnp.float32)
        for kh in range(3):
            for kw in range(3):
                start = (h0 + kh) * Wp + kw
                xs = xp_ref[0, start:start + TH * Wp, :]
                acc = acc + jnp.dot(xs, w_ref[kh * 3 + kw],
                                    preferred_element_type=jnp.float32)
        y = jnp.maximum(acc * s + b, 0.0)      # folded BN + ReLU (f32)
        y = jnp.where(valid, y, 0.0)           # mask wrapped columns
        run_max = jnp.maximum(run_max, jnp.max(y, axis=0, keepdims=True))
    o_ref[...] = run_max


def conv3x3_bn_relu_maxpool(x_nhwc, w9, s, b):
    """3x3 conv (stride 1, pad 1) + folded BN + ReLU + global spatial max pool.

    Returns the pooled (B, Cout) vector only -- the dense feature map never
    goes back to HBM.
    """
    B, H, W, Cin = x_nhwc.shape
    Cout = w9.shape[2]
    TH = H if H <= 16 else next(d for d in (14, 8, 7, 4, 2, 1) if H % d == 0)
    Wp = W + 2
    P = (H + 4) * Wp
    # TODO(synk): fuse this zero-padding into the preceding 1x1-conv epilogue.
    xpf = jnp.pad(x_nhwc, ((0, 0), (1, 3), (1, 1), (0, 0))).reshape(B, P, Cin)
    kernel = functools.partial(_conv3x3_pool_kernel, H=H, W=W, TH=TH)
    return pl.pallas_call(
        kernel,
        out_shape=jax.ShapeDtypeStruct((B, Cout), jnp.float32),
        grid=(B,),
        in_specs=[
            pl.BlockSpec((1, P, Cin), lambda bi: (bi, 0, 0)),
            pl.BlockSpec((9, Cin, Cout), lambda bi: (0, 0, 0)),   # taps resident
            pl.BlockSpec((1, Cout), lambda bi: (0, 0)),
            pl.BlockSpec((1, Cout), lambda bi: (0, 0)),
        ],
        out_specs=pl.BlockSpec((1, Cout), lambda bi: (bi, 0)),
        compiler_params=pltpu.CompilerParams(
            dimension_semantics=("parallel",),
            vmem_limit_bytes=40 * 1024 * 1024),
    )(xpf, w9, s, b)


# --------------------- fused classifier heads (3 branches) -------------------

def _heads_kernel(x_ref, a1_ref, b1_ref, w1_ref, c1_ref,
                  a2_ref, b2_ref, w2_ref, c2_ref, o_ref):
    # classifier_i: BN1d(1024) -> Linear(1024,512) -> BN1d(512) -> ELU -> Linear(512,nc)
    h = x_ref[0] * a1_ref[0] + b1_ref[0]                               # (B, 1024) f32
    h = jnp.dot(h.astype(w1_ref.dtype), w1_ref[0],
                preferred_element_type=jnp.float32) + c1_ref[0]
    h = h * a2_ref[0] + b2_ref[0]
    h = jnp.where(h > 0.0, h, jnp.expm1(h))                            # ELU(alpha=1)
    o_ref[0] = jnp.dot(h.astype(w2_ref.dtype), w2_ref[0],
                       preferred_element_type=jnp.float32) + c2_ref[0]


def classifier_heads(xh, hp):
    Nb, B, C = xh.shape
    H1 = hp["W1"].shape[2]
    NCp = hp["W2"].shape[2]
    return pl.pallas_call(
        _heads_kernel,
        out_shape=jax.ShapeDtypeStruct((Nb, B, NCp), jnp.float32),
        grid=(Nb,),
        in_specs=[
            pl.BlockSpec((1, B, C), lambda i: (i, 0, 0)),
            pl.BlockSpec((1, 1, C), lambda i: (i, 0, 0)),
            pl.BlockSpec((1, 1, C), lambda i: (i, 0, 0)),
            pl.BlockSpec((1, C, H1), lambda i: (i, 0, 0)),
            pl.BlockSpec((1, 1, H1), lambda i: (i, 0, 0)),
            pl.BlockSpec((1, 1, H1), lambda i: (i, 0, 0)),
            pl.BlockSpec((1, 1, H1), lambda i: (i, 0, 0)),
            pl.BlockSpec((1, H1, NCp), lambda i: (i, 0, 0)),
            pl.BlockSpec((1, 1, NCp), lambda i: (i, 0, 0)),
        ],
        out_specs=pl.BlockSpec((1, B, NCp), lambda i: (i, 0, 0)),
        compiler_params=pltpu.CompilerParams(dimension_semantics=("parallel",)),
    )(xh, hp["A1"], hp["B1"], hp["W1"], hp["C1"],
      hp["A2"], hp["B2"], hp["W2"], hp["C2"])


# ------------------ classifier_pool (avg) + classifier_initial ---------------

def _avgpool_fc_kernel(x_ref, w_ref, b_ref, o_ref):
    xm = jnp.mean(x_ref[0].astype(jnp.float32), axis=0, keepdims=True)   # (1, C)
    o_ref[...] = jnp.dot(xm.astype(w_ref.dtype), w_ref[...],
                         preferred_element_type=jnp.float32) + b_ref[...]


def avgpool_fc(xf, w, b):
    # TODO(synk): could be folded into the layer-7 conv epilogue to skip one launch.
    B, HW, C = xf.shape
    NCp = w.shape[1]
    return pl.pallas_call(
        _avgpool_fc_kernel,
        out_shape=jax.ShapeDtypeStruct((B, NCp), jnp.float32),
        grid=(B,),
        in_specs=[
            pl.BlockSpec((1, HW, C), lambda bi: (bi, 0, 0)),
            pl.BlockSpec((C, NCp), lambda bi: (0, 0)),
            pl.BlockSpec((1, NCp), lambda bi: (0, 0)),
        ],
        out_specs=pl.BlockSpec((1, NCp), lambda bi: (bi, 0)),
        compiler_params=pltpu.CompilerParams(dimension_semantics=("parallel",)),
    )(xf, w, b)


# ----------------------------- parameters ------------------------------------

def init_params(key, num_class):
    keys = iter(jax.random.split(key, 64))
    ncp = max(128, ((num_class + 127) // 128) * 128)   # lane-dense classifier dim

    def w(shape, scale, dtype=jnp.bfloat16):
        return (scale * jax.random.normal(next(keys), shape, jnp.float32)).astype(dtype)

    def affine(n):
        # folded inference-mode BatchNorm: y = x * s + b  (f32)
        s = 1.0 + 0.1 * jax.random.normal(next(keys), (1, n), jnp.float32)
        b = 0.1 * jax.random.normal(next(keys), (1, n), jnp.float32)
        return s, b

    def conv1x1(cin, cout):
        Wt = w((cin, cout), 1.0 / math.sqrt(cin))
        s, b = affine(cout)
        return Wt, s, b

    p = {"nc": num_class, "ncp": ncp}
    # synthetic Features backbone (net_layers)
    p["W0"], p["s0"], p["b0"] = conv1x1(4, 64)        # layers 0-2: conv + BN + ReLU
    p["W4"], p["s4"], p["b4"] = conv1x1(64, 256)      # layer 4
    p["W5"], p["s5"], p["b5"] = conv1x1(256, 512)     # layer 5 -> x1 (512 ch)
    p["W6"], p["s6"], p["b6"] = conv1x1(512, 1024)    # layer 6 -> x2 (stride 2)
    p["W7"], p["s7"], p["b7"] = conv1x1(1024, 2048)   # layer 7 -> x3 (stride 2)

    # classifier_pool (avgpool) + classifier_initial (Linear 2048 -> num_class)
    Wfc = w((2048, num_class), 1.0 / math.sqrt(2048), jnp.float32)
    bfc = 0.1 * jax.random.normal(next(keys), (1, num_class), jnp.float32)
    p["Wfc"] = jnp.pad(Wfc, ((0, 0), (0, ncp - num_class))).astype(jnp.bfloat16)
    p["bfc"] = jnp.pad(bfc, ((0, 0), (0, ncp - num_class)))

    def branch(cin):
        d = {}
        d["Wa"], d["sa"], d["ba"] = conv1x1(cin, 512)                  # BasicConv 1x1
        d["Wb"] = w((9, 512, 1024), 1.0 / math.sqrt(9 * 512))           # BasicConv 3x3
        d["sb"], d["bb"] = affine(1024)
        d["a1"], d["b1"] = affine(1024)                                 # BatchNorm1d(1024)
        d["W1"] = w((1024, 512), 1.0 / math.sqrt(1024))                 # Linear(1024, 512)
        d["c1"] = 0.1 * jax.random.normal(next(keys), (1, 512), jnp.float32)
        d["a2"], d["b2"] = affine(512)                                  # BatchNorm1d(512)
        W2 = w((512, num_class), 1.0 / math.sqrt(512), jnp.float32)     # Linear(512, nc)
        c2 = 0.1 * jax.random.normal(next(keys), (1, num_class), jnp.float32)
        d["W2"] = jnp.pad(W2, ((0, 0), (0, ncp - num_class))).astype(jnp.bfloat16)
        d["c2"] = jnp.pad(c2, ((0, 0), (0, ncp - num_class)))
        return d

    blks = [branch(512), branch(1024), branch(2048)]
    p["blk1"], p["blk2"], p["blk3"] = blks
    # stacked per-branch params for the single fused classifier-heads kernel
    p["heads"] = {
        "A1": jnp.stack([d["a1"] for d in blks]),
        "B1": jnp.stack([d["b1"] for d in blks]),
        "W1": jnp.stack([d["W1"] for d in blks]),
        "C1": jnp.stack([d["c1"] for d in blks]),
        "A2": jnp.stack([d["a2"] for d in blks]),
        "B2": jnp.stack([d["b2"] for d in blks]),
        "W2": jnp.stack([d["W2"] for d in blks]),
        "C2": jnp.stack([d["c2"] for d in blks]),
    }
    return p


# ----------------------------- forward pass ----------------------------------

def network_wrapper_forward(x_nchw, p):
    nc = p["nc"]
    x = jnp.transpose(x_nchw, (0, 2, 3, 1)).astype(jnp.bfloat16)    # NCHW -> NHWC

    def conv1x1(h, Wt, s, b):
        Bh, Hh, Ww, C = h.shape
        y = mm_affine(h.reshape(Bh * Hh * Ww, C), Wt, s, b, relu=True)
        return y.reshape(Bh, Hh, Ww, Wt.shape[1])

    # --- Features (synthetic backbone) ---
    h = conv1x1(x, p["W0"], p["s0"], p["b0"])                        # layers 0-2
    Bh, Hh, Ww, C = h.shape
    # layer 3: 2x2/2 max-pool stem
    # TODO(synk): fold the stem max-pool into the layer-4 kernel to avoid one HBM pass.
    h = h.reshape(Bh, Hh // 2, 2, Ww // 2, 2, C).max(axis=(2, 4))
    h = conv1x1(h, p["W4"], p["s4"], p["b4"])                        # layer 4
    x1 = conv1x1(h, p["W5"], p["s5"], p["b5"])                       # layer 5 -> x1
    x2 = conv1x1_stride2(x1, p["W6"], p["s6"], p["b6"])              # layer 6 -> x2
    x3 = conv1x1_stride2(x2, p["W7"], p["s7"], p["b7"])              # layer 7 -> x3

    map1 = jnp.transpose(x1, (0, 3, 1, 2)).astype(jnp.float32)       # x1.clone() (NCHW)
    map2 = jnp.transpose(x2, (0, 3, 1, 2)).astype(jnp.float32)       # x2.clone()
    map3 = jnp.transpose(x3, (0, 3, 1, 2)).astype(jnp.float32)       # x3.clone()

    # classifiers = classifier_initial(classifier_pool(x3).view(B, -1))
    B3, H3, W3, C3 = x3.shape
    classifiers = avgpool_fc(x3.reshape(B3, H3 * W3, C3),
                             p["Wfc"], p["bfc"])[:, :nc]

    # three branches: 1x1 conv -> 3x3 conv+BN+ReLU -> global max pool (fused)
    pooled = []
    for feat, blk in ((x1, p["blk1"]), (x2, p["blk2"]), (x3, p["blk3"])):
        h1 = conv1x1(feat, blk["Wa"], blk["sa"], blk["ba"])
        pooled.append(conv3x3_bn_relu_maxpool(h1, blk["Wb"], blk["sb"], blk["bb"]))

    logits = classifier_heads(jnp.stack(pooled, axis=0), p["heads"])  # (3, B, NCp)
    x1_c = logits[0][:, :nc]
    x2_c = logits[1][:, :nc]
    x3_c = logits[2][:, :nc]
    return x1_c, x2_c, x3_c, classifiers, map1, map2, map3


# ----------------------------- main ------------------------------------------

if __name__ == "__main__":
    num_class = 16
    root = jax.random.PRNGKey(0)
    kx, kp = jax.random.split(root)

    x = jax.random.normal(kx, (2, 4, 16, 16), jnp.float32)           # NCHW input
    params = init_params(kp, num_class)

    outs = network_wrapper_forward(x, params)
    outs = jax.block_until_ready(outs)
    x1_c, x2_c, x3_c, classifiers, map1, map2, map3 = outs

    assert x1_c.shape == (2, num_class)
    assert x2_c.shape == (2, num_class)
    assert x3_c.shape == (2, num_class)
    assert classifiers.shape == (2, num_class)
    assert map1.shape == (2, 512, 8, 8)
    assert map2.shape == (2, 1024, 4, 4)
    assert map3.shape == (2, 2048, 2, 2)
    for o in (x1_c, x2_c, x3_c, classifiers):
        assert bool(jnp.all(jnp.isfinite(o)))

    print("KERNEL_OK")
</pallas_src>

<mosaic_0001>
module attributes {stable_mosaic.version = 11 : i64} {
  func.func @_mm_affine_kernel(%arg0: i32, %arg1: i32, %arg2: i32, %arg3: memref<256x4xbf16, #tpu.memory_space<vmem>>, %arg4: memref<4x64xbf16, #tpu.memory_space<vmem>>, %arg5: memref<1x64xf32, #tpu.memory_space<vmem>>, %arg6: memref<1x64xf32, #tpu.memory_space<vmem>>, %arg7: memref<256x64xbf16, #tpu.memory_space<vmem>>, %arg8: memref<256x64xf32, #tpu.memory_space<vmem>>) attributes {dimension_semantics = [#tpu.dimension_semantics<parallel>, #tpu.dimension_semantics<parallel>, #tpu.dimension_semantics<arbitrary>], iteration_bounds = array<i64: 2, 1, 1>, scalar_prefetch = 0 : i64, scratch_operands = 1 : i64, tpu.core_type = #tpu.core_type<tc>, window_params = [{transform_indices = @transform_0, window_bounds = array<i64: 256, 4>}, {transform_indices = @transform_1, window_bounds = array<i64: 4, 64>}, {transform_indices = @transform_2, window_bounds = array<i64: 1, 64>}, {transform_indices = @transform_3, window_bounds = array<i64: 1, 64>}, {transform_indices = @transform_4, window_bounds = array<i64: 256, 64>}]} {
    %c0_i32 = arith.constant 0 : i32
    %0 = arith.cmpi eq, %arg2, %c0_i32 : i32
    %1 = arith.extui %0 : i1 to i32
    %c0_i32_0 = arith.constant 0 : i32
    %2 = arith.cmpi ne, %1, %c0_i32_0 : i32
    scf.if %2 {
      %cst_10 = arith.constant 0.000000e+00 : f32
      %12 = vector.broadcast %cst_10 : f32 to vector<256x64xf32>
      %c0_11 = arith.constant 0 : index
      %c0_12 = arith.constant 0 : index
      %13 = vector.load %arg8[%c0_11, %c0_12] : memref<256x64xf32, #tpu.memory_space<vmem>>, vector<256x64xf32>
      tpu.vector_store %arg8[%c0_11, %c0_12], %12 {strides = array<i32>} : memref<256x64xf32, #tpu.memory_space<vmem>>, vector<256x64xf32>,
    } else {
    }
    %c0 = arith.constant 0 : index
    %c0_1 = arith.constant 0 : index
    %3 = vector.load %arg8[%c0, %c0_1] : memref<256x64xf32, #tpu.memory_space<vmem>>, vector<256x64xf32>
    %c0_2 = arith.constant 0 : index
    %c0_3 = arith.constant 0 : index
    %4 = vector.load %arg3[%c0_2, %c0_3] : memref<256x4xbf16, #tpu.memory_space<vmem>>, vector<256x4xbf16>
    %c0_4 = arith.constant 0 : index
    %c0_5 = arith.constant 0 : index
    %5 = vector.load %arg4[%c0_4, %c0_5] : memref<4x64xbf16, #tpu.memory_space<vmem>>, vector<4x64xbf16>
    %cst = arith.constant dense<0.000000e+00> : vector<256x64xf32>
    %6 = tpu.matmul %4, %5, %cst {dimension_numbers = #tpu.dot_dimension_numbers<[1], [0], [0], [1], [0, 0, 1, 1], [], []>} : vector<256x4xbf16>, vector<4x64xbf16>, vector<256x64xf32> -> vector<256x64xf32>
    %7 = arith.addf %3, %6 : vector<256x64xf32>
    %c0_6 = arith.constant 0 : index
    %c0_7 = arith.constant 0 : index
    %8 = vector.load %arg8[%c0_6, %c0_7] : memref<256x64xf32, #tpu.memory_space<vmem>>, vector<256x64xf32>
    tpu.vector_store %arg8[%c0_6, %c0_7], %7 {strides = array<i32>} : memref<256x64xf32, #tpu.memory_space<vmem>>, vector<256x64xf32>,
    %c0_i32_8 = arith.constant 0 : i32
    %9 = arith.cmpi eq, %arg2, %c0_i32_8 : i32
    %10 = arith.extui %9 : i1 to i32
    %c0_i32_9 = arith.constant 0 : i32
    %11 = arith.cmpi ne, %10, %c0_i32_9 : i32
    scf.if %11 {
      %c0_10 = arith.constant 0 : index
      %c0_11 = arith.constant 0 : index
      %12 = vector.load %arg8[%c0_10, %c0_11] : memref<256x64xf32, #tpu.memory_space<vmem>>, vector<256x64xf32>
      %c0_12 = arith.constant 0 : index
      %c0_13 = arith.constant 0 : index
      %13 = vector.load %arg5[%c0_12, %c0_13] : memref<1x64xf32, #tpu.memory_space<vmem>>, vector<1x64xf32>
      %14 = vector.broadcast %13 : vector<1x64xf32> to vector<256x64xf32>
      %15 = arith.mulf %12, %14 : vector<256x64xf32>
      %c0_14 = arith.constant 0 : index
      %c0_15 = arith.constant 0 : index
      %16 = vector.load %arg6[%c0_14, %c0_15] : memref<1x64xf32, #tpu.memory_space<vmem>>, vector<1x64xf32>
      %17 = vector.broadcast %16 : vector<1x64xf32> to vector<256x64xf32>
      %18 = arith.addf %15, %17 : vector<256x64xf32>
      %cst_16 = arith.constant 0.000000e+00 : f32
      %19 = vector.broadcast %cst_16 : f32 to vector<256x64xf32>
      %20 = arith.maximumf %18, %19 : vector<256x64xf32>
      %21 = arith.truncf %20 : vector<256x64xf32> to vector<256x64xbf16>
      %c0_17 = arith.constant 0 : index
      %c0_18 = arith.constant 0 : index
      %22 = vector.load %arg7[%c0_17, %c0_18] : memref<256x64xbf16, #tpu.memory_space<vmem>>, vector<256x64xbf16>
      tpu.vector_store %arg7[%c0_17, %c0_18], %21 {strides = array<i32>} : memref<256x64xbf16, #tpu.memory_space<vmem>>, vector<256x64xbf16>,
    } else {
    }
    return
  }
  func.func @transform_0(%arg0: i32, %arg1: i32, %arg2: i32) -> (i32, i32) {
    %c0_i32 = arith.constant 0 : i32
    return %arg0, %arg2 : i32, i32
  }
  func.func @transform_1(%arg0: i32, %arg1: i32, %arg2: i32) -> (i32, i32) {
    %c0_i32 = arith.constant 0 : i32
    return %arg2, %arg1 : i32, i32
  }
  func.func @transform_2(%arg0: i32, %arg1: i32, %arg2: i32) -> (i32, i32) {
    %c0_i32 = arith.constant 0 : i32
    %c0_i32_0 = arith.constant 0 : i32
    return %c0_i32, %arg1 : i32, i32
  }
  func.func @transform_3(%arg0: i32, %arg1: i32, %arg2: i32) -> (i32, i32) {
    %c0_i32 = arith.constant 0 : i32
    %c0_i32_0 = arith.constant 0 : i32
    return %c0_i32, %arg1 : i32, i32
  }
  func.func @transform_4(%arg0: i32, %arg1: i32, %arg2: i32) -> (i32, i32) {
    %c0_i32 = arith.constant 0 : i32
    return %arg0, %arg1 : i32, i32
  }
}

</mosaic_0001>

<llo_original>
// kernel: tpu_custom_call.1
$region0: #{tpu_custom_call.1}
  #allocation0 [shape = 'u32[]', space=smem, size = 0x4, offset = 0x4, fixed_abs, tag = 'smem constant byte address 0x4 - core index']
  #allocation1 [shape = 'u32[144,128]{1,0:T(1,128)}', space=vmem, size = 0x12000, scoped, tag = 'internal scratch']
  #allocation2 [shape = 'f32[256,64]{1,0:T(8,128)}', space=vmem, size = 0x20000, scoped, tag = 'scratch operand']
  %s0 = inlined_call_operand.vmem [shape: bf16[512,4], index: 0, kind: input, shape index: {}]
  %s1 = inlined_call_operand.vmem [shape: bf16[4,64], index: 1, kind: input, shape index: {}]
  %s2 = inlined_call_operand.vmem [shape: f32[1,64], index: 2, kind: input, shape index: {}]
  %s3 = inlined_call_operand.vmem [shape: f32[1,64], index: 3, kind: input, shape index: {}]
  %s4 = inlined_call_operand.vmem [shape: bf16[512,64], index: 4, kind: output, shape index: {}]
  %s5 = sld [smem:[#allocation0]]
  $region57: #{tpu_custom_call.1} parent=0
    _
  %s7 = ssub.s32 1, %s5
  %s8 = scalar_select 0, %s7, %s5
  loop: start=0, step=1, limit=4
  $region2: #{tpu_custom_call.1} parent=0 // loop_pre_header
    _
  $region3: #{tpu_custom_call.1} parent=0 // loop_header
    %s10 = sphi 0, %s14
    %p11 = scmp.ge.s32.totalorder %s10, 4
    %s17 = sphi 0, %s36
    %s18 = sphi 0, %s32
    %s19 = sphi 0, %s28
    %s20 = sphi 0, %s17
    %s21 = sphi 0, %s18
    %s22 = sphi 0, %s19
    %s23 = sphi 0, %s20
    %s24 = sphi 0, %s21
    %s25 = sphi 0, %s22
    %s41 = sphi 0, %s43
    %s44 = sphi 0, %s41
    %s45 = sphi 0, %s44
    %s61 = sphi 0, %s45
    %s69 = sphi 0, %s71
    %s72 = sphi 0, %s69
    %s73 = sphi 0, %s72
    %s89 = sphi 0, %s73
    %s95 = sphi 0, %s97
    %s98 = sphi 0, %s95
    %s99 = sphi 0, %s98
    %s115 = sphi 0, %s99
    %s121 = sphi 0, %s123
    %s124 = sphi 0, %s121
    %s125 = sphi 0, %s124
    %s141 = sphi 0, %s125
    %s149 = sphi 0, %s151
    %s152 = sphi 0, %s149
    %s153 = sphi 0, %s152
    %s169 = sphi 0, %s153
  $region4: #{tpu_custom_call.1} parent=0 // loop_header_branch
    %13 = sbr.rel (%p11) target = $region8
  $region5: #{tpu_custom_call.1} parent=0 // loop_body
    %s15 = ssub.s32 %s10, 1
    %s16 = ssub.s32 %s10, 2
    %s26 = sadd.s32 1, %s19
    %p27 = scmp.ge.s32.totalorder %s26, 1
    %s28 = scalar_select %p27, 0, %s26
    %s29 = sadd.s32 1, %s18
    %s30 = scalar_select %p27, %s29, %s18
    %p31 = scmp.ge.s32.totalorder %s30, 1
    %s32 = scalar_select %p31, 0, %s30
    %s33 = sadd.s32 1, %s17
    %s34 = scalar_select %p31, %s33, %s17
    %p35 = scmp.ge.s32.totalorder %s34, 2
    %s36 = scalar_select %p35, 0, %s34
    %s37 = ssub.s32 %s17, %s36
    %s38 = ssub.s32 %s19, %s28
    %s39 = sor.u32 %s37, %s38
    %p40 = scmp.eq.s32.totalorder %s39, 0
    %s42 = sadd.s32 %s41, 1
    %s43 = scalar_select %p40, %s41, %s42
    %p46 = pneg %p40
    %p47 = scmp.eq.s32.totalorder %s10, 1
    %p48 = por %p46, %p47
    %p49 = scmp.ne.s32.totalorder %s41, %s44
    %p50 = scmp.eq.s32.totalorder %s10, 0
    %p51 = por %p49, %p50
    %p52 = scmp.ne.s32.totalorder %s41, %s44
    %p53 = scmp.eq.s32.totalorder %s15, 1
    %p54 = por %p52, %p53
    %p55 = scmp.ne.s32.totalorder %s44, %s45
    %p56 = scmp.eq.s32.totalorder %s15, 0
    %p57 = por %p55, %p56
    %p58 = scmp.ne.s32.totalorder %s44, %s45
    %p59 = scmp.eq.s32.totalorder %s16, 1
    %p60 = por %p58, %p59
    %p62 = scmp.ne.s32.totalorder %s45, %s61
    %p63 = scmp.eq.s32.totalorder %s16, 0
    %p64 = por %p62, %p63
    %s65 = ssub.s32 %s19, %s28
    %s66 = ssub.s32 %s18, %s32
    %s67 = sor.u32 %s65, %s66
    %p68 = scmp.eq.s32.totalorder %s67, 0
    %s70 = sadd.s32 %s69, 1
    %s71 = scalar_select %p68, %s69, %s70
    %p74 = pneg %p68
    %p75 = scmp.eq.s32.totalorder %s10, 1
    %p76 = por %p74, %p75
    %p77 = scmp.ne.s32.totalorder %s69, %s72
    %p78 = scmp.eq.s32.totalorder %s10, 0
    %p79 = por %p77, %p78
    %p80 = scmp.ne.s32.totalorder %s69, %s72
    %p81 = scmp.eq.s32.totalorder %s15, 1
    %p82 = por %p80, %p81
    %p83 = scmp.ne.s32.totalorder %s72, %s73
    %p84 = scmp.eq.s32.totalorder %s15, 0
    %p85 = por %p83, %p84
    %p86 = scmp.ne.s32.totalorder %s72, %s73
    %p87 = scmp.eq.s32.totalorder %s16, 1
    %p88 = por %p86, %p87
    %p90 = scmp.ne.s32.totalorder %s73, %s89
    %p91 = scmp.eq.s32.totalorder %s16, 0
    %p92 = por %p90, %p91
    %s93 = ssub.s32 %s18, %s32
    %p94 = scmp.eq.s32.totalorder %s93, 0
    %s96 = sadd.s32 %s95, 1
    %s97 = scalar_select %p94, %s95, %s96
    %p100 = pneg %p94
    %p101 = scmp.eq.s32.totalorder %s10, 1
    %p102 = por %p100, %p101
    %p103 = scmp.ne.s32.totalorder %s95, %s98
    %p104 = scmp.eq.s32.totalorder %s10, 0
    %p105 = por %p103, %p104
    %p106 = scmp.ne.s32.totalorder %s95, %s98
    %p107 = scmp.eq.s32.totalorder %s15, 1
    %p108 = por %p106, %p107
    %p109 = scmp.ne.s32.totalorder %s98, %s99
    %p110 = scmp.eq.s32.totalorder %s15, 0
    %p111 = por %p109, %p110
    %p112 = scmp.ne.s32.totalorder %s98, %s99
    %p113 = scmp.eq.s32.totalorder %s16, 1
    %p114 = por %p112, %p113
    %p116 = scmp.ne.s32.totalorder %s99, %s115
    %p117 = scmp.eq.s32.totalorder %s16, 0
    %p118 = por %p116, %p117
    %s119 = ssub.s32 %s18, %s32
    %p120 = scmp.eq.s32.totalorder %s119, 0
    %s122 = sadd.s32 %s121, 1
    %s123 = scalar_select %p120, %s121, %s122
    %p126 = pneg %p120
    %p127 = scmp.eq.s32.totalorder %s10, 1
    %p128 = por %p126, %p127
    %p129 = scmp.ne.s32.totalorder %s121, %s124
    %p130 = scmp.eq.s32.totalorder %s10, 0
    %p131 = por %p129, %p130
    %p132 = scmp.ne.s32.totalorder %s121, %s124
    %p133 = scmp.eq.s32.totalorder %s15, 1
    %p134 = por %p132, %p133
    %p135 = scmp.ne.s32.totalorder %s124, %s125
    %p136 = scmp.eq.s32.totalorder %s15, 0
    %p137 = por %p135, %p136
    %p138 = scmp.ne.s32.totalorder %s124, %s125
    %p139 = scmp.eq.s32.totalorder %s16, 1
    %p140 = por %p138, %p139
    %p142 = scmp.ne.s32.totalorder %s125, %s141
    %p143 = scmp.eq.s32.totalorder %s16, 0
    %p144 = por %p142, %p143
    %s145 = ssub.s32 %s17, %s36
    %s146 = ssub.s32 %s18, %s32
    %s147 = sor.u32 %s145, %s146
    %p148 = scmp.eq.s32.totalorder %s147, 0
    %s150 = sadd.s32 %s149, 1
    %s151 = scalar_select %p148, %s149, %s150
    %p154 = pneg %p148
    %p155 = scmp.eq.s32.totalorder %s10, 1
    %p156 = por %p154, %p155
    %p157 = scmp.ne.s32.totalorder %s149, %s152
    %p158 = scmp.eq.s32.totalorder %s10, 0
    %p159 = por %p157, %p158
    %p160 = scmp.ne.s32.totalorder %s149, %s152
    %p161 = scmp.eq.s32.totalorder %s15, 1
    %p162 = por %p160, %p161
    %p163 = scmp.ne.s32.totalorder %s152, %s153
    %p164 = scmp.eq.s32.totalorder %s15, 0
    %p165 = por %p163, %p164
    %p166 = scmp.ne.s32.totalorder %s152, %s153
    %p167 = scmp.eq.s32.totalorder %s16, 1
    %p168 = por %p166, %p167
    %p170 = scmp.ne.s32.totalorder %s153, %s169
    %p171 = scmp.eq.s32.totalorder %s16, 0
    %p172 = por %p170, %p171
    %p173 = scmp.le.s32.totalorder 1, %s10
    %p174 = scmp.lt.s32.totalorder %s10, 3
    %p175 = pnand %p173, %p174
    %p176 = pneg %p175
    // Predicated region
    $region9: #{tpu_custom_call.1} parent=5 // pred_check
      _
    $region10: #{tpu_custom_call.1} parent=5 // pred_check_branch
      %178 = sbr.rel (%p175) target = $region12
    $region11: #{tpu_custom_call.1} parent=5 // pred_region
      %s179 = ssub.s32 %s10, 1
      // Predicated region
      $region13: #{tpu_custom_call.1} parent=11 // pred_check
        %p180 = pneg %p85
      $region14: #{tpu_custom_call.1} parent=11 // pred_check_branch
        %182 = sbr.rel (%p180) target = $region16
      $region15: #{tpu_custom_call.1} parent=11 // pred_region
        %p183 = scmp.lt.s32.totalorder %s22, 0
        %s184 = scalar_select %p183, %s22, 0
        %p185 = scmp.lt.s32.totalorder %s21, 0
        %s186 = scalar_select %p185, %s21, 0
        %s187 = sadd.s32 %s186, %s184
        %s188 = smul.addr %s187, 2
        %s189 = scalar_lea.vmem %s1, %s188
      $region16: #{tpu_custom_call.1} parent=11 // pred_fallthru
        _
      // Predicated region
      $region17: #{tpu_custom_call.1} parent=11 // pred_check
        %p190 = pneg %p111
      $region18: #{tpu_custom_call.1} parent=11 // pred_check_branch
        %192 = sbr.rel (%p190) target = $region20
      $region19: #{tpu_custom_call.1} parent=11 // pred_region
        %p193 = scmp.lt.s32.totalorder %s21, 0
        %s194 = scalar_select %p193, %s21, 0
        %s195 = scalar_lea.vmem %s2, %s194
      $region20: #{tpu_custom_call.1} parent=11 // pred_fallthru
        _
      // Predicated region
      $region21: #{tpu_custom_call.1} parent=11 // pred_check
        %p196 = pneg %p137
      $region22: #{tpu_custom_call.1} parent=11 // pred_check_branch
        %198 = sbr.rel (%p196) target = $region24
      $region23: #{tpu_custom_call.1} parent=11 // pred_region
        %p199 = scmp.lt.s32.totalorder %s21, 0
        %s200 = scalar_select %p199, %s21, 0
        %s201 = scalar_lea.vmem %s3, %s200
      $region24: #{tpu_custom_call.1} parent=11 // pred_fallthru
        _
    $region12: #{tpu_custom_call.1} parent=5 // pred_fallthru
      _
    %p202 = scmp.lt.s32.totalorder %s10, 2
    // Predicated region
    $region25: #{tpu_custom_call.1} parent=5 // pred_check
      %p203 = pneg %p202
    $region26: #{tpu_custom_call.1} parent=5 // pred_check_branch
      %205 = sbr.rel (%p203) target = $region28
    $region27: #{tpu_custom_call.1} parent=5 // pred_region
      // Predicated region
      $region29: #{tpu_custom_call.1} parent=27 // pred_check
        %p206 = pneg %p51
      $region30: #{tpu_custom_call.1} parent=27 // pred_check_branch
        %208 = sbr.rel (%p206) target = $region32
      $region31: #{tpu_custom_call.1} parent=27 // pred_region
        %s209 = smul.u32 32, %s17
        %p210 = scmp.lt.s32.totalorder %s209, 63
        %s211 = scalar_select %p210, %s209, 63
        %p212 = scmp.lt.s32.totalorder %s19, 0
        %s213 = scalar_select %p212, %s19, 0
        %s214 = sadd.s32 %s213, %s211
        %s215 = smul.addr %s214, 4
        %s216 = scalar_lea.vmem %s0, %s215
        %s217 = smul.u32 32, %s17
      $region32: #{tpu_custom_call.1} parent=27 // pred_fallthru
        _
    $region28: #{tpu_custom_call.1} parent=5 // pred_fallthru
      _
    %p218 = scmp.le.s32.totalorder 1, %s10
    %p219 = scmp.lt.s32.totalorder %s10, 3
    %p220 = pnand %p218, %p219
    %p221 = pneg %p220
    // Predicated region
    $region33: #{tpu_custom_call.1} parent=5 // pred_check
      _
    $region34: #{tpu_custom_call.1} parent=5 // pred_check_branch
      %223 = sbr.rel (%p220) target = $region36
    $region35: #{tpu_custom_call.1} parent=5 // pred_region
      %s224 = ssub.s32 %s10, 1
      %s225 = smul.u32 32, %s20
      %p226 = scmp.lt.s32.totalorder %s225, 63
      %s227 = scalar_select %p226, %s225, 63
      %p228 = scmp.lt.s32.totalorder %s22, 0
      %s229 = scalar_select %p228, %s22, 0
      %s230 = sadd.s32 %s229, %s227
      %s231 = smul.addr %s230, 4
      %s232 = scalar_lea.vmem %s0, %s231
      %p233 = pneg %p57
      %p234 = pneg %p54
      %p235 = scmp.lt.s32.totalorder %s22, 0
      %s236 = scalar_select %p235, %s22, 0
      %p237 = scmp.lt.s32.totalorder %s21, 0
      %s238 = scalar_select %p237, %s21, 0
      %s239 = sadd.s32 %s238, %s236
      %s240 = smul.addr %s239, 2
      %s241 = scalar_lea.vmem %s1, %s240
      %p242 = pneg %p85
      %p243 = pneg %p82
      %p244 = scmp.lt.s32.totalorder %s21, 0
      %s245 = scalar_select %p244, %s21, 0
      %s246 = scalar_lea.vmem %s2, %s245
      %p247 = pneg %p111
      %p248 = pneg %p108
      %p249 = scmp.lt.s32.totalorder %s21, 0
      %s250 = scalar_select %p249, %s21, 0
      %s251 = scalar_lea.vmem %s3, %s250
      %p252 = pneg %p137
      %p253 = pneg %p134
      %p254 = pneg %p165
      %p255 = pneg %p162
      %s256 = smul.u32 32, %s20
      %p257 = scmp.lt.s32.totalorder %s256, 63
      %s258 = scalar_select %p257, %s256, 63
      %p259 = scmp.lt.s32.totalorder %s21, 0
      %s260 = scalar_select %p259, %s21, 0
      %s261 = sadd.s32 %s260, %s258
      %s262 = smul.addr %s261, 4
      %s263 = scalar_lea.vmem %s4, %s262
      %s264 = smul.u32 32, %s20
      %p265 = scmp.lt.s32.totalorder %s264, 63
      %s266 = scalar_select %p265, %s264, 63
      %p267 = scmp.lt.s32.totalorder %s22, 0
      %s268 = scalar_select %p267, %s22, 0
      %s269 = sadd.s32 %s268, %s266
      %s270 = smul.addr %s269, 4
      %s271 = scalar_lea.vmem %s0, %s270
      %s272 = smul.u32 32, %s20
      %p273 = scmp.lt.s32.totalorder %s22, 0
      %s274 = scalar_select %p273, %s22, 0
      %p275 = scmp.lt.s32.totalorder %s21, 0
      %s276 = scalar_select %p275, %s21, 0
      %s277 = sadd.s32 %s276, %s274
      %s278 = smul.addr %s277, 2
      %s279 = scalar_lea.vmem %s1, %s278
      %p280 = scmp.lt.s32.totalorder %s21, 0
      %s281 = scalar_select %p280, %s21, 0
      %s282 = scalar_lea.vmem %s2, %s281
      %p283 = scmp.lt.s32.totalorder %s21, 0
      %s284 = scalar_select %p283, %s21, 0
      %s285 = scalar_lea.vmem %s3, %s284
      %s286 = smul.u32 32, %s20
      %p287 = scmp.lt.s32.totalorder %s286, 63
      %s288 = scalar_select %p287, %s286, 63
      %p289 = scmp.lt.s32.totalorder %s21, 0
      %s290 = scalar_select %p289, %s21, 0
      %s291 = sadd.s32 %s290, %s288
      %s292 = smul.addr %s291, 4
      %s293 = scalar_lea.vmem %s4, %s292
      %s294 = smul.u32 32, %s20
      %p296 = scmp.eq.s32.totalorder %s22, 0
      // Predicated region
      $region37: #{tpu_custom_call.1} parent=35 // pred_check
        %p297 = pneg %p296
      $region38: #{tpu_custom_call.1} parent=35 // pred_check_branch
        %299 = sbr.rel (%p297) target = $region40
      $region39: #{tpu_custom_call.1} parent=35 // pred_region
        %vm300 = vcmask 523264
        %301 = vst.msk [vmem:[#allocation2] sm:$0xff] %vm300, 0.0
        %302 = vst.msk [vmem:[#allocation2 + $0x8] sm:$0xff] %vm300, 0.0
        %303 = vst.msk [vmem:[#allocation2 + $0x10] sm:$0xff] %vm300, 0.0
        %304 = vst.msk [vmem:[#allocation2 + $0x18] sm:$0xff] %vm300, 0.0
        %305 = vst.msk [vmem:[#allocation2 + $0x20] sm:$0xff] %vm300, 0.0
        %306 = vst.msk [vmem:[#allocation2 + $0x28] sm:$0xff] %vm300, 0.0
        %307 = vst.msk [vmem:[#allocation2 + $0x30] sm:$0xff] %vm300, 0.0
        %308 = vst.msk [vmem:[#allocation2 + $0x38] sm:$0xff] %vm300, 0.0
        %309 = vst.msk [vmem:[#allocation2 + $0x40] sm:$0xff] %vm300, 0.0
        %310 = vst.msk [vmem:[#allocation2 + $0x48] sm:$0xff] %vm300, 0.0
        %311 = vst.msk [vmem:[#allocation2 + $0x50] sm:$0xff] %vm300, 0.0
        %312 = vst.msk [vmem:[#allocation2 + $0x58] sm:$0xff] %vm300, 0.0
        %313 = vst.msk [vmem:[#allocation2 + $0x60] sm:$0xff] %vm300, 0.0
        %314 = vst.msk [vmem:[#allocation2 + $0x68] sm:$0xff] %vm300, 0.0
        %315 = vst.msk [vmem:[#allocation2 + $0x70] sm:$0xff] %vm300, 0.0
        %316 = vst.msk [vmem:[#allocation2 + $0x78] sm:$0xff] %vm300, 0.0
        %317 = vst.msk [vmem:[#allocation2 + $0x80] sm:$0xff] %vm300, 0.0
        %318 = vst.msk [vmem:[#allocation2 + $0x88] sm:$0xff] %vm300, 0.0
        %319 = vst.msk [vmem:[#allocation2 + $0x90] sm:$0xff] %vm300, 0.0
        %320 = vst.msk [vmem:[#allocation2 + $0x98] sm:$0xff] %vm300, 0.0
        %321 = vst.msk [vmem:[#allocation2 + $0xa0] sm:$0xff] %vm300, 0.0
        %322 = vst.msk [vmem:[#allocation2 + $0xa8] sm:$0xff] %vm300, 0.0
        %323 = vst.msk [vmem:[#allocation2 + $0xb0] sm:$0xff] %vm300, 0.0
        %324 = vst.msk [vmem:[#allocation2 + $0xb8] sm:$0xff] %vm300, 0.0
        %325 = vst.msk [vmem:[#allocation2 + $0xc0] sm:$0xff] %vm300, 0.0
        %326 = vst.msk [vmem:[#allocation2 + $0xc8] sm:$0xff] %vm300, 0.0
        %327 = vst.msk [vmem:[#allocation2 + $0xd0] sm:$0xff] %vm300, 0.0
        %328 = vst.msk [vmem:[#allocation2 + $0xd8] sm:$0xff] %vm300, 0.0
        %329 = vst.msk [vmem:[#allocation2 + $0xe0] sm:$0xff] %vm300, 0.0
        %330 = vst.msk [vmem:[#allocation2 + $0xe8] sm:$0xff] %vm300, 0.0
        %331 = vst.msk [vmem:[#allocation2 + $0xf0] sm:$0xff] %vm300, 0.0
        %332 = vst.msk [vmem:[#allocation2 + $0xf8] sm:$0xff] %vm300, 0.0
      $region40: #{tpu_custom_call.1} parent=35 // pred_fallthru
        _
      %v333 = vld [vmem:[#allocation2] sm:$0xff]
      %v334 = vld [vmem:[#allocation2 + $0x8] sm:$0xff]
      %v335 = vld [vmem:[#allocation2 + $0x10] sm:$0xff]
      %v336 = vld [vmem:[#allocation2 + $0x18] sm:$0xff]
      %v337 = vld [vmem:[#allocation2 + $0x20] sm:$0xff]
      %v338 = vld [vmem:[#allocation2 + $0x28] sm:$0xff]
      %v339 = vld [vmem:[#allocation2 + $0x30] sm:$0xff]
      %v340 = vld [vmem:[#allocation2 + $0x38] sm:$0xff]
      %v341 = vld [vmem:[#allocation2 + $0x40] sm:$0xff]
      %v342 = vld [vmem:[#allocation2 + $0x48] sm:$0xff]
      %v343 = vld [vmem:[#allocation2 + $0x50] sm:$0xff]
      %v344 = vld [vmem:[#allocation2 + $0x58] sm:$0xff]
      %v345 = vld [vmem:[#allocation2 + $0x60] sm:$0xff]
      %v346 = vld [vmem:[#allocation2 + $0x68] sm:$0xff]
      %v347 = vld [vmem:[#allocation2 + $0x70] sm:$0xff]
      %v348 = vld [vmem:[#allocation2 + $0x78] sm:$0xff]
      %v349 = vld [vmem:[#allocation2 + $0x80] sm:$0xff]
      %v350 = vld [vmem:[#allocation2 + $0x88] sm:$0xff]
      %v351 = vld [vmem:[#allocation2 + $0x90] sm:$0xff]
      %v352 = vld [vmem:[#allocation2 + $0x98] sm:$0xff]
      %v353 = vld [vmem:[#allocation2 + $0xa0] sm:$0xff]
      %v354 = vld [vmem:[#allocation2 + $0xa8] sm:$0xff]
      %v355 = vld [vmem:[#allocation2 + $0xb0] sm:$0xff]
      %v356 = vld [vmem:[#allocation2 + $0xb8] sm:$0xff]
      %v357 = vld [vmem:[#allocation2 + $0xc0] sm:$0xff]
      %v358 = vld [vmem:[#allocation2 + $0xc8] sm:$0xff]
      %v359 = vld [vmem:[#allocation2 + $0xd0] sm:$0xff]
      %v360 = vld [vmem:[#allocation2 + $0xd8] sm:$0xff]
      %v361 = vld [vmem:[#allocation2 + $0xe0] sm:$0xff]
      %v362 = vld [vmem:[#allocation2 + $0xe8] sm:$0xff]
      %v363 = vld [vmem:[#allocation2 + $0xf0] sm:$0xff]
      %v364 = vld [vmem:[#allocation2 + $0xf8] sm:$0xff]
      %v365 = vld [vmem:[%s271] sm:$0xf]
      %v366 = vld [vmem:[%s271 + $0x4] sm:$0xf]
      %v367 = vld [vmem:[%s271 + $0x8] sm:$0xf]
      %v368 = vld [vmem:[%s271 + $0xc] sm:$0xf]
      %v369 = vld [vmem:[%s271 + $0x10] sm:$0xf]
      %v370 = vld [vmem:[%s271 + $0x14] sm:$0xf]
      %v371 = vld [vmem:[%s271 + $0x18] sm:$0xf]
      %v372 = vld [vmem:[%s271 + $0x1c] sm:$0xf]
      %v373 = vld [vmem:[%s271 + $0x20] sm:$0xf]
      %v374 = vld [vmem:[%s271 + $0x24] sm:$0xf]
      %v375 = vld [vmem:[%s271 + $0x28] sm:$0xf]
      %v376 = vld [vmem:[%s271 + $0x2c] sm:$0xf]
      %v377 = vld [vmem:[%s271 + $0x30] sm:$0xf]
      %v378 = vld [vmem:[%s271 + $0x34] sm:$0xf]
      %v379 = vld [vmem:[%s271 + $0x38] sm:$0xf]
      %v380 = vld [vmem:[%s271 + $0x3c] sm:$0xf]
      %v381 = vld [vmem:[%s271 + $0x40] sm:$0xf]
      %v382 = vld [vmem:[%s271 + $0x44] sm:$0xf]
      %v383 = vld [vmem:[%s271 + $0x48] sm:$0xf]
      %v384 = vld [vmem:[%s271 + $0x4c] sm:$0xf]
      %v385 = vld [vmem:[%s271 + $0x50] sm:$0xf]
      %v386 = vld [vmem:[%s271 + $0x54] sm:$0xf]
      %v387 = vld [vmem:[%s271 + $0x58] sm:$0xf]
      %v388 = vld [vmem:[%s271 + $0x5c] sm:$0xf]
      %v389 = vld [vmem:[%s271 + $0x60] sm:$0xf]
      %v390 = vld [vmem:[%s271 + $0x64] sm:$0xf]
      %v391 = vld [vmem:[%s271 + $0x68] sm:$0xf]
      %v392 = vld [vmem:[%s271 + $0x6c] sm:$0xf]
      %v393 = vld [vmem:[%s271 + $0x70] sm:$0xf]
      %v394 = vld [vmem:[%s271 + $0x74] sm:$0xf]
      %v395 = vld [vmem:[%s271 + $0x78] sm:$0xf]
      %v396 = vld [vmem:[%s271 + $0x7c] sm:$0xf]
      %v397 = vld [vmem:[%s279] sm:$0x3]
      %v430 = vunpack.c.l.b16 %v365
      %v431 = vunpack.c.l.b16 %v366
      %v432 = vunpack.c.l.b16 %v367
      %v433 = vunpack.c.l.b16 %v368
      %v434 = vunpack.c.l.b16 %v369
      %v435 = vunpack.c.l.b16 %v370
      %v436 = vunpack.c.l.b16 %v371
      %v437 = vunpack.c.l.b16 %v372
      %v438 = vunpack.c.l.b16 %v373
      %v439 = vunpack.c.l.b16 %v374
      %v440 = vunpack.c.l.b16 %v375
      %v441 = vunpack.c.l.b16 %v376
      %v442 = vunpack.c.l.b16 %v377
      %v443 = vunpack.c.l.b16 %v378
      %v444 = vunpack.c.l.b16 %v379
      %v445 = vunpack.c.l.b16 %v380
      %v446 = vunpack.c.l.b16 %v381
      %v447 = vunpack.c.l.b16 %v382
      %v448 = vunpack.c.l.b16 %v383
      %v449 = vunpack.c.l.b16 %v384
      %v450 = vunpack.c.l.b16 %v385
      %v451 = vunpack.c.l.b16 %v386
      %v452 = vunpack.c.l.b16 %v387
      %v453 = vunpack.c.l.b16 %v388
      %v454 = vunpack.c.l.b16 %v389
      %v455 = vunpack.c.l.b16 %v390
      %v456 = vunpack.c.l.b16 %v391
      %v457 = vunpack.c.l.b16 %v392
      %v458 = vunpack.c.l.b16 %v393
      %v459 = vunpack.c.l.b16 %v394
      %v460 = vunpack.c.l.b16 %v395
      %v461 = vunpack.c.l.b16 %v396
      %v462 = vpack.c.b16 %v431, %v430
      %v463 = vpack.c.b16 %v433, %v432
      %v464 = vpack.c.b16 %v435, %v434
      %v465 = vpack.c.b16 %v437, %v436
      %v466 = vpack.c.b16 %v439, %v438
      %v467 = vpack.c.b16 %v441, %v440
      %v468 = vpack.c.b16 %v443, %v442
      %v469 = vpack.c.b16 %v445, %v444
      %v470 = vpack.c.b16 %v447, %v446
      %v471 = vpack.c.b16 %v449, %v448
      %v472 = vpack.c.b16 %v451, %v450
      %v473 = vpack.c.b16 %v453, %v452
      %v474 = vpack.c.b16 %v455, %v454
      %v475 = vpack.c.b16 %v457, %v456
      %v476 = vpack.c.b16 %v459, %v458
      %v477 = vpack.c.b16 %v461, %v460
      %vm478 = vcmask 31744
      %v480 = vsel %vm478, %v462, 0
      %v483 = vsel %vm478, %v463, 0
      %v486 = vsel %vm478, %v464, 0
      %v489 = vsel %vm478, %v465, 0
      %v492 = vsel %vm478, %v466, 0
      %v495 = vsel %vm478, %v467, 0
      %v498 = vsel %vm478, %v468, 0
      %v501 = vsel %vm478, %v469, 0
      %v504 = vsel %vm478, %v470, 0
      %v507 = vsel %vm478, %v471, 0
      %v510 = vsel %vm478, %v472, 0
      %v513 = vsel %vm478, %v473, 0
      %v516 = vsel %vm478, %v474, 0
      %v519 = vsel %vm478, %v475, 0
      %v522 = vsel %vm478, %v476, 0
      %v525 = vsel %vm478, %v477, 0
      %vm527 = vcmask 1041408
      %v529 = vsel %vm527, %v397, 0
      %531 = vmatprep.subr.bf16.mxu0 0
      %532 = vmatpush1.bf16.msra.mxu0 0
      %533 = vmatprep.subr.bf16.mxu0 0
      %534 = vmatpush1.bf16.msra.mxu0 0
      %535 = vmatprep.subr.bf16.mxu0 0
      %536 = vmatpush1.bf16.msra.mxu0 0
      %537 = vmatprep.subr.bf16.mxu0 0
      %538 = vmatpush1.bf16.msra.mxu0 0
      %539 = vmatprep.subr.bf16.mxu0 0
      %540 = vmatpush1.bf16.msra.mxu0 0
      %541 = vmatprep.subr.bf16.mxu0 0
      %542 = vmatpush1.bf16.msra.mxu0 0
      %543 = vmatprep.subr.bf16.mxu0 0
      %544 = vmatpush1.bf16.msra.mxu0 0
      %545 = vmatprep.subr.bf16.mxu0 0
      %546 = vmatpush1.bf16.msra.mxu0 %v529
      %547 = vmatprep.subr.bf16.mxu0 0
      %548 = vmatpush2.bf16.msra.mxu0 0
      %549 = vmatprep.subr.bf16.mxu0 0
      %550 = vmatpush2.bf16.msra.mxu0 0
      %551 = vmatprep.subr.bf16.mxu0 0
      %552 = vmatpush2.bf16.msra.mxu0 0
      %553 = vmatprep.subr.bf16.mxu0 0
      %554 = vmatpush2.bf16.msra.mxu0 0
      %555 = vmatprep.subr.bf16.mxu0 0
      %556 = vmatpush2.bf16.msra.mxu0 0
      %557 = vmatprep.subr.bf16.mxu0 0
      %558 = vmatpush2.bf16.msra.mxu0 0
      %559 = vmatprep.subr.bf16.mxu0 0
      %560 = vmatpush2.bf16.msra.mxu0 0
      %561 = vmatprep.subr.bf16.mxu0 0
      %562 = vmatpush2.bf16.msra.mxu0 0
      %563 = vmatprep.mubr.bf16.mxu0 0
      %564 = vmatmul.mubr.bf16.gmra.mxu0 %v480
      %v565 = vpop.f32.mrf.mxu0
      %v566 = vadd.f32 0.0, %v565
      %v567 = vpop.f32.mrf.mxu0
      %v568 = vpop.f32.mrf.mxu0
      %v569 = vadd.f32 0.0, %v568
      %v570 = vpop.f32.mrf.mxu0
      %571 = vmatprep.mubr.bf16.mxu0 0
      %572 = vmatmul.mubr.bf16.gmra.mxu0 %v483
      %v573 = vpop.f32.mrf.mxu0
      %v574 = vadd.f32 0.0, %v573
      %v575 = vpop.f32.mrf.mxu0
      %v576 = vpop.f32.mrf.mxu0
      %v577 = vadd.f32 0.0, %v576
      %v578 = vpop.f32.mrf.mxu0
      %579 = vmatprep.mubr.bf16.mxu0 0
      %580 = vmatmul.mubr.bf16.gmra.mxu0 %v486
      %v581 = vpop.f32.mrf.mxu0
      %v582 = vadd.f32 0.0, %v581
      %v583 = vpop.f32.mrf.mxu0
      %v584 = vpop.f32.mrf.mxu0
      %v585 = vadd.f32 0.0, %v584
      %v586 = vpop.f32.mrf.mxu0
      %587 = vmatprep.mubr.bf16.mxu0 0
      %588 = vmatmul.mubr.bf16.gmra.mxu0 %v489
      %v589 = vpop.f32.mrf.mxu0
      %v590 = vadd.f32 0.0, %v589
      %v591 = vpop.f32.mrf.mxu0
      %v592 = vpop.f32.mrf.mxu0
      %v593 = vadd.f32 0.0, %v592
      %v594 = vpop.f32.mrf.mxu0
      %595 = vmatprep.mubr.bf16.mxu0 0
      %596 = vmatmul.mubr.bf16.gmra.mxu0 %v492
      %v597 = vpop.f32.mrf.mxu0
      %v598 = vadd.f32 0.0, %v597
      %v599 = vpop.f32.mrf.mxu0
      %v600 = vpop.f32.mrf.mxu0
      %v601 = vadd.f32 0.0, %v600
      %v602 = vpop.f32.mrf.mxu0
      %603 = vmatprep.mubr.bf16.mxu0 0
      %604 = vmatmul.mubr.bf16.gmra.mxu0 %v495
      %v605 = vpop.f32.mrf.mxu0
      %v606 = vadd.f32 0.0, %v605
      %v607 = vpop.f32.mrf.mxu0
      %v608 = vpop.f32.mrf.mxu0
      %v609 = vadd.f32 0.0, %v608
      %v610 = vpop.f32.mrf.mxu0
      %611 = vmatprep.mubr.bf16.mxu0 0
      %612 = vmatmul.mubr.bf16.gmra.mxu0 %v498
      %v613 = vpop.f32.mrf.mxu0
      %v614 = vadd.f32 0.0, %v613
      %v615 = vpop.f32.mrf.mxu0
      %v616 = vpop.f32.mrf.mxu0
      %v617 = vadd.f32 0.0, %v616
      %v618 = vpop.f32.mrf.mxu0
      %619 = vmatprep.mubr.bf16.mxu0 0
      %620 = vmatmul.mubr.bf16.gmra.mxu0 %v501
      %v621 = vpop.f32.mrf.mxu0
      %v622 = vadd.f32 0.0, %v621
      %v623 = vpop.f32.mrf.mxu0
      %v624 = vpop.f32.mrf.mxu0
      %v625 = vadd.f32 0.0, %v624
      %v626 = vpop.f32.mrf.mxu0
      %627 = vmatprep.mubr.bf16.mxu0 0
      %628 = vmatmul.mubr.bf16.gmra.mxu0 %v504
      %v629 = vpop.f32.mrf.mxu0
      %v630 = vadd.f32 0.0, %v629
      %v631 = vpop.f32.mrf.mxu0
      %v632 = vpop.f32.mrf.mxu0
      %v633 = vadd.f32 0.0, %v632
      %v634 = vpop.f32.mrf.mxu0
      %635 = vmatprep.mubr.bf16.mxu0 0
      %636 = vmatmul.mubr.bf16.gmra.mxu0 %v507
      %v637 = vpop.f32.mrf.mxu0
      %v638 = vadd.f32 0.0, %v637
      %v639 = vpop.f32.mrf.mxu0
      %v640 = vpop.f32.mrf.mxu0
      %v641 = vadd.f32 0.0, %v640
      %v642 = vpop.f32.mrf.mxu0
      %643 = vmatprep.mubr.bf16.mxu0 0
      %644 = vmatmul.mubr.bf16.gmra.mxu0 %v510
      %v645 = vpop.f32.mrf.mxu0
      %v646 = vadd.f32 0.0, %v645
      %v647 = vpop.f32.mrf.mxu0
      %v648 = vpop.f32.mrf.mxu0
      %v649 = vadd.f32 0.0, %v648
      %v650 = vpop.f32.mrf.mxu0
      %651 = vmatprep.mubr.bf16.mxu0 0
      %652 = vmatmul.mubr.bf16.gmra.mxu0 %v513
      %v653 = vpop.f32.mrf.mxu0
      %v654 = vadd.f32 0.0, %v653
      %v655 = vpop.f32.mrf.mxu0
      %v656 = vpop.f32.mrf.mxu0
      %v657 = vadd.f32 0.0, %v656
      %v658 = vpop.f32.mrf.mxu0
      %659 = vmatprep.mubr.bf16.mxu0 0
      %660 = vmatmul.mubr.bf16.gmra.mxu0 %v516
      %v661 = vpop.f32.mrf.mxu0
      %v662 = vadd.f32 0.0, %v661
      %v663 = vpop.f32.mrf.mxu0
      %v664 = vpop.f32.mrf.mxu0
      %v665 = vadd.f32 0.0, %v664
      %v666 = vpop.f32.mrf.mxu0
      %667 = vmatprep.mubr.bf16.mxu0 0
      %668 = vmatmul.mubr.bf16.gmra.mxu0 %v519
      %v669 = vpop.f32.mrf.mxu0
      %v670 = vadd.f32 0.0, %v669
      %v671 = vpop.f32.mrf.mxu0
      %v672 = vpop.f32.mrf.mxu0
      %v673 = vadd.f32 0.0, %v672
      %v674 = vpop.f32.mrf.mxu0
      %675 = vmatprep.mubr.bf16.mxu0 0
      %676 = vmatmul.mubr.bf16.gmra.mxu0 %v522
      %v677 = vpop.f32.mrf.mxu0
      %v678 = vadd.f32 0.0, %v677
      %v679 = vpop.f32.mrf.mxu0
      %v680 = vpop.f32.mrf.mxu0
      %v681 = vadd.f32 0.0, %v680
      %v682 = vpop.f32.mrf.mxu0
      %683 = vmatprep.mubr.bf16.mxu0 0
      %684 = vmatmul.mubr.bf16.gmra.mxu0 %v525
      %v685 = vpop.f32.mrf.mxu0
      %v686 = vadd.f32 0.0, %v685
      %v687 = vpop.f32.mrf.mxu0
      %v688 = vpop.f32.mrf.mxu0
      %v689 = vadd.f32 0.0, %v688
      %v690 = vpop.f32.mrf.mxu0
      %691 = vdwg.mxu0
      %v692 = vadd.f32 %v333, %v566
      %v693 = vadd.f32 %v334, %v569
      %v694 = vadd.f32 %v335, %v574
      %v695 = vadd.f32 %v336, %v577
      %v696 = vadd.f32 %v337, %v582
      %v697 = vadd.f32 %v338, %v585
      %v698 = vadd.f32 %v339, %v590
      %v699 = vadd.f32 %v340, %v593
      %v700 = vadd.f32 %v341, %v598
      %v701 = vadd.f32 %v342, %v601
      %v702 = vadd.f32 %v343, %v606
      %v703 = vadd.f32 %v344, %v609
      %v704 = vadd.f32 %v345, %v614
      %v705 = vadd.f32 %v346, %v617
      %v706 = vadd.f32 %v347, %v622
      %v707 = vadd.f32 %v348, %v625
      %v708 = vadd.f32 %v349, %v630
      %v709 = vadd.f32 %v350, %v633
      %v710 = vadd.f32 %v351, %v638
      %v711 = vadd.f32 %v352, %v641
      %v712 = vadd.f32 %v353, %v646
      %v713 = vadd.f32 %v354, %v649
      %v714 = vadd.f32 %v355, %v654
      %v715 = vadd.f32 %v356, %v657
      %v716 = vadd.f32 %v357, %v662
      %v717 = vadd.f32 %v358, %v665
      %v718 = vadd.f32 %v359, %v670
      %v719 = vadd.f32 %v360, %v673
      %v720 = vadd.f32 %v361, %v678
      %v721 = vadd.f32 %v362, %v681
      %v722 = vadd.f32 %v363, %v686
      %v723 = vadd.f32 %v364, %v689
      %vm724 = vcmask 523264
      %725 = vst.msk [vmem:[#allocation2] sm:$0xff] %vm724, %v692
      %726 = vst.msk [vmem:[#allocation2 + $0x8] sm:$0xff] %vm724, %v693
      %727 = vst.msk [vmem:[#allocation2 + $0x10] sm:$0xff] %vm724, %v694
      %728 = vst.msk [vmem:[#allocation2 + $0x18] sm:$0xff] %vm724, %v695
      %729 = vst.msk [vmem:[#allocation2 + $0x20] sm:$0xff] %vm724, %v696
      %730 = vst.msk [vmem:[#allocation2 + $0x28] sm:$0xff] %vm724, %v697
      %731 = vst.msk [vmem:[#allocation2 + $0x30] sm:$0xff] %vm724, %v698
      %732 = vst.msk [vmem:[#allocation2 + $0x38] sm:$0xff] %vm724, %v699
      %733 = vst.msk [vmem:[#allocation2 + $0x40] sm:$0xff] %vm724, %v700
      %734 = vst.msk [vmem:[#allocation2 + $0x48] sm:$0xff] %vm724, %v701
      %735 = vst.msk [vmem:[#allocation2 + $0x50] sm:$0xff] %vm724, %v702
      %736 = vst.msk [vmem:[#allocation2 + $0x58] sm:$0xff] %vm724, %v703
      %737 = vst.msk [vmem:[#allocation2 + $0x60] sm:$0xff] %vm724, %v704
      %738 = vst.msk [vmem:[#allocation2 + $0x68] sm:$0xff] %vm724, %v705
      %739 = vst.msk [vmem:[#allocation2 + $0x70] sm:$0xff] %vm724, %v706
      %740 = vst.msk [vmem:[#allocation2 + $0x78] sm:$0xff] %vm724, %v707
      %741 = vst.msk [vmem:[#allocation2 + $0x80] sm:$0xff] %vm724, %v708
      %742 = vst.msk [vmem:[#allocation2 + $0x88] sm:$0xff] %vm724, %v709
      %743 = vst.msk [vmem:[#allocation2 + $0x90] sm:$0xff] %vm724, %v710
      %744 = vst.msk [vmem:[#allocation2 + $0x98] sm:$0xff] %vm724, %v711
      %745 = vst.msk [vmem:[#allocation2 + $0xa0] sm:$0xff] %vm724, %v712
      %746 = vst.msk [vmem:[#allocation2 + $0xa8] sm:$0xff] %vm724, %v713
      %747 = vst.msk [vmem:[#allocation2 + $0xb0] sm:$0xff] %vm724, %v714
      %748 = vst.msk [vmem:[#allocation2 + $0xb8] sm:$0xff] %vm724, %v715
      %749 = vst.msk [vmem:[#allocation2 + $0xc0] sm:$0xff] %vm724, %v716
      %750 = vst.msk [vmem:[#allocation2 + $0xc8] sm:$0xff] %vm724, %v717
      %751 = vst.msk [vmem:[#allocation2 + $0xd0] sm:$0xff] %vm724, %v718
      %752 = vst.msk [vmem:[#allocation2 + $0xd8] sm:$0xff] %vm724, %v719
      %753 = vst.msk [vmem:[#allocation2 + $0xe0] sm:$0xff] %vm724, %v720
      %754 = vst.msk [vmem:[#allocation2 + $0xe8] sm:$0xff] %vm724, %v721
      %755 = vst.msk [vmem:[#allocation2 + $0xf0] sm:$0xff] %vm724, %v722
      %756 = vst.msk [vmem:[#allocation2 + $0xf8] sm:$0xff] %vm724, %v723
      // Predicated region
      $region41: #{tpu_custom_call.1} parent=35 // pred_check
        %p757 = pneg %p296
      $region42: #{tpu_custom_call.1} parent=35 // pred_check_branch
        %759 = sbr.rel (%p757) target = $region44
      $region43: #{tpu_custom_call.1} parent=35 // pred_region
        %v760 = vld [vmem:[#allocation2] sm:$0xff]
        %v761 = vld [vmem:[#allocation2 + $0x8] sm:$0xff]
        %v762 = vld [vmem:[#allocation2 + $0x10] sm:$0xff]
        %v763 = vld [vmem:[#allocation2 + $0x18] sm:$0xff]
        %v764 = vld [vmem:[#allocation2 + $0x20] sm:$0xff]
        %v765 = vld [vmem:[#allocation2 + $0x28] sm:$0xff]
        %v766 = vld [vmem:[#allocation2 + $0x30] sm:$0xff]
        %v767 = vld [vmem:[#allocation2 + $0x38] sm:$0xff]
        %v768 = vld [vmem:[#allocation2 + $0x40] sm:$0xff]
        %v769 = vld [vmem:[#allocation2 + $0x48] sm:$0xff]
        %v770 = vld [vmem:[#allocation2 + $0x50] sm:$0xff]
        %v771 = vld [vmem:[#allocation2 + $0x58] sm:$0xff]
        %v772 = vld [vmem:[#allocation2 + $0x60] sm:$0xff]
        %v773 = vld [vmem:[#allocation2 + $0x68] sm:$0xff]
        %v774 = vld [vmem:[#allocation2 + $0x70] sm:$0xff]
        %v775 = vld [vmem:[#allocation2 + $0x78] sm:$0xff]
        %v776 = vld [vmem:[#allocation2 + $0x80] sm:$0xff]
        %v777 = vld [vmem:[#allocation2 + $0x88] sm:$0xff]
        %v778 = vld [vmem:[#allocation2 + $0x90] sm:$0xff]
        %v779 = vld [vmem:[#allocation2 + $0x98] sm:$0xff]
        %v780 = vld [vmem:[#allocation2 + $0xa0] sm:$0xff]
        %v781 = vld [vmem:[#allocation2 + $0xa8] sm:$0xff]
        %v782 = vld [vmem:[#allocation2 + $0xb0] sm:$0xff]
        %v783 = vld [vmem:[#allocation2 + $0xb8] sm:$0xff]
        %v784 = vld [vmem:[#allocation2 + $0xc0] sm:$0xff]
        %v785 = vld [vmem:[#allocation2 + $0xc8] sm:$0xff]
        %v786 = vld [vmem:[#allocation2 + $0xd0] sm:$0xff]
        %v787 = vld [vmem:[#allocation2 + $0xd8] sm:$0xff]
        %v788 = vld [vmem:[#allocation2 + $0xe0] sm:$0xff]
        %v789 = vld [vmem:[#allocation2 + $0xe8] sm:$0xff]
        %v790 = vld [vmem:[#allocation2 + $0xf0] sm:$0xff]
        %v791 = vld [vmem:[#allocation2 + $0xf8] sm:$0xff]
        %v792 = vld [vmem:[%s282] sm:$0x1]
        %v794 = vlaneseq
        %v795 = vshrl.u32 %v794, 7
        %v796 = vsub.s32 0, %v795
        %v797 = vrot.slane %v792, %v796
        %v799 = vmul.f32 %v760, %v797
        %v800 = vmul.f32 %v761, %v797
        %v801 = vmul.f32 %v762, %v797
        %v802 = vmul.f32 %v763, %v797
        %v803 = vmul.f32 %v764, %v797
        %v804 = vmul.f32 %v765, %v797
        %v805 = vmul.f32 %v766, %v797
        %v806 = vmul.f32 %v767, %v797
        %v807 = vmul.f32 %v768, %v797
        %v808 = vmul.f32 %v769, %v797
        %v809 = vmul.f32 %v770, %v797
        %v810 = vmul.f32 %v771, %v797
        %v811 = vmul.f32 %v772, %v797
        %v812 = vmul.f32 %v773, %v797
        %v813 = vmul.f32 %v774, %v797
        %v814 = vmul.f32 %v775, %v797
        %v815 = vmul.f32 %v776, %v797
        %v816 = vmul.f32 %v777, %v797
        %v817 = vmul.f32 %v778, %v797
        %v818 = vmul.f32 %v779, %v797
        %v819 = vmul.f32 %v780, %v797
        %v820 = vmul.f32 %v781, %v797
        %v821 = vmul.f32 %v782, %v797
        %v822 = vmul.f32 %v783, %v797
        %v823 = vmul.f32 %v784, %v797
        %v824 = vmul.f32 %v785, %v797
        %v825 = vmul.f32 %v786, %v797
        %v826 = vmul.f32 %v787, %v797
        %v827 = vmul.f32 %v788, %v797
        %v828 = vmul.f32 %v789, %v797
        %v829 = vmul.f32 %v790, %v797
        %v830 = vmul.f32 %v791, %v797
        %v831 = vld [vmem:[%s285] sm:$0x1]
        %v833 = vlaneseq
        %v834 = vshrl.u32 %v833, 7
        %v835 = vsub.s32 0, %v834
        %v836 = vrot.slane %v831, %v835
        %v838 = vadd.f32 %v799, %v836
        %v839 = vadd.f32 %v800, %v836
        %v840 = vadd.f32 %v801, %v836
        %v841 = vadd.f32 %v802, %v836
        %v842 = vadd.f32 %v803, %v836
        %v843 = vadd.f32 %v804, %v836
        %v844 = vadd.f32 %v805, %v836
        %v845 = vadd.f32 %v806, %v836
        %v846 = vadd.f32 %v807, %v836
        %v847 = vadd.f32 %v808, %v836
        %v848 = vadd.f32 %v809, %v836
        %v849 = vadd.f32 %v810, %v836
        %v850 = vadd.f32 %v811, %v836
        %v851 = vadd.f32 %v812, %v836
        %v852 = vadd.f32 %v813, %v836
        %v853 = vadd.f32 %v814, %v836
        %v854 = vadd.f32 %v815, %v836
        %v855 = vadd.f32 %v816, %v836
        %v856 = vadd.f32 %v817, %v836
        %v857 = vadd.f32 %v818, %v836
        %v858 = vadd.f32 %v819, %v836
        %v859 = vadd.f32 %v820, %v836
        %v860 = vadd.f32 %v821, %v836
        %v861 = vadd.f32 %v822, %v836
        %v862 = vadd.f32 %v823, %v836
        %v863 = vadd.f32 %v824, %v836
        %v864 = vadd.f32 %v825, %v836
        %v865 = vadd.f32 %v826, %v836
        %v866 = vadd.f32 %v827, %v836
        %v867 = vadd.f32 %v828, %v836
        %v868 = vadd.f32 %v829, %v836
        %v869 = vadd.f32 %v830, %v836
        %v870 = vmax.f32 %v838, 0.0
        %v871 = vmax.f32 %v839, 0.0
        %v872 = vmax.f32 %v840, 0.0
        %v873 = vmax.f32 %v841, 0.0
        %v874 = vmax.f32 %v842, 0.0
        %v875 = vmax.f32 %v843, 0.0
        %v876 = vmax.f32 %v844, 0.0
        %v877 = vmax.f32 %v845, 0.0
        %v878 = vmax.f32 %v846, 0.0
        %v879 = vmax.f32 %v847, 0.0
        %v880 = vmax.f32 %v848, 0.0
        %v881 = vmax.f32 %v849, 0.0
        %v882 = vmax.f32 %v850, 0.0
        %v883 = vmax.f32 %v851, 0.0
        %v884 = vmax.f32 %v852, 0.0
        %v885 = vmax.f32 %v853, 0.0
        %v886 = vmax.f32 %v854, 0.0
        %v887 = vmax.f32 %v855, 0.0
        %v888 = vmax.f32 %v856, 0.0
        %v889 = vmax.f32 %v857, 0.0
        %v890 = vmax.f32 %v858, 0.0
        %v891 = vmax.f32 %v859, 0.0
        %v892 = vmax.f32 %v860, 0.0
        %v893 = vmax.f32 %v861, 0.0
        %v894 = vmax.f32 %v862, 0.0
        %v895 = vmax.f32 %v863, 0.0
        %v896 = vmax.f32 %v864, 0.0
        %v897 = vmax.f32 %v865, 0.0
        %v898 = vmax.f32 %v866, 0.0
        %v899 = vmax.f32 %v867, 0.0
        %v900 = vmax.f32 %v868, 0.0
        %v901 = vmax.f32 %v869, 0.0
        %v902 = vpack.c.bf16 %v871, %v870
        %v903 = vpack.c.bf16 %v873, %v872
        %v904 = vpack.c.bf16 %v875, %v874
        %v905 = vpack.c.bf16 %v877, %v876
        %v906 = vpack.c.bf16 %v879, %v878
        %v907 = vpack.c.bf16 %v881, %v880
        %v908 = vpack.c.bf16 %v883, %v882
        %v909 = vpack.c.bf16 %v885, %v884
        %v910 = vpack.c.bf16 %v887, %v886
        %v911 = vpack.c.bf16 %v889, %v888
        %v912 = vpack.c.bf16 %v891, %v890
        %v913 = vpack.c.bf16 %v893, %v892
        %v914 = vpack.c.bf16 %v895, %v894
        %v915 = vpack.c.bf16 %v897, %v896
        %v916 = vpack.c.bf16 %v899, %v898
        %v917 = vpack.c.bf16 %v901, %v900
        %v934 = vunpack.c.l.b16 %v902
        %v935 = vunpack.c.h.b16 %v902
        %v936 = vunpack.c.l.b16 %v903
        %v937 = vunpack.c.h.b16 %v903
        %v938 = vunpack.c.l.b16 %v904
        %v939 = vunpack.c.h.b16 %v904
        %v940 = vunpack.c.l.b16 %v905
        %v941 = vunpack.c.h.b16 %v905
        %v942 = vunpack.c.l.b16 %v906
        %v943 = vunpack.c.h.b16 %v906
        %v944 = vunpack.c.l.b16 %v907
        %v945 = vunpack.c.h.b16 %v907
        %v946 = vunpack.c.l.b16 %v908
        %v947 = vunpack.c.h.b16 %v908
        %v948 = vunpack.c.l.b16 %v909
        %v949 = vunpack.c.h.b16 %v909
        %v950 = vunpack.c.l.b16 %v910
        %v951 = vunpack.c.h.b16 %v910
        %v952 = vunpack.c.l.b16 %v911
        %v953 = vunpack.c.h.b16 %v911
        %v954 = vunpack.c.l.b16 %v912
        %v955 = vunpack.c.h.b16 %v912
        %v956 = vunpack.c.l.b16 %v913
        %v957 = vunpack.c.h.b16 %v913
        %v958 = vunpack.c.l.b16 %v914
        %v959 = vunpack.c.h.b16 %v914
        %v960 = vunpack.c.l.b16 %v915
        %v961 = vunpack.c.h.b16 %v915
        %v962 = vunpack.c.l.b16 %v916
        %v963 = vunpack.c.h.b16 %v916
        %v964 = vunpack.c.l.b16 %v917
        %v965 = vunpack.c.h.b16 %v917
        %v966 = vpack.c.b16 %v934, %v934
        %v967 = vpack.c.b16 %v935, %v935
        %v968 = vpack.c.b16 %v936, %v936
        %v969 = vpack.c.b16 %v937, %v937
        %v970 = vpack.c.b16 %v938, %v938
        %v971 = vpack.c.b16 %v939, %v939
        %v972 = vpack.c.b16 %v940, %v940
        %v973 = vpack.c.b16 %v941, %v941
        %v974 = vpack.c.b16 %v942, %v942
        %v975 = vpack.c.b16 %v943, %v943
        %v976 = vpack.c.b16 %v944, %v944
        %v977 = vpack.c.b16 %v945, %v945
        %v978 = vpack.c.b16 %v946, %v946
        %v979 = vpack.c.b16 %v947, %v947
        %v980 = vpack.c.b16 %v948, %v948
        %v981 = vpack.c.b16 %v949, %v949
        %v982 = vpack.c.b16 %v950, %v950
        %v983 = vpack.c.b16 %v951, %v951
        %v984 = vpack.c.b16 %v952, %v952
        %v985 = vpack.c.b16 %v953, %v953
        %v986 = vpack.c.b16 %v954, %v954
        %v987 = vpack.c.b16 %v955, %v955
        %v988 = vpack.c.b16 %v956, %v956
        %v989 = vpack.c.b16 %v957, %v957
        %v990 = vpack.c.b16 %v958, %v958
        %v991 = vpack.c.b16 %v959, %v959
        %v992 = vpack.c.b16 %v960, %v960
        %v993 = vpack.c.b16 %v961, %v961
        %v994 = vpack.c.b16 %v962, %v962
        %v995 = vpack.c.b16 %v963, %v963
        %v996 = vpack.c.b16 %v964, %v964
        %v997 = vpack.c.b16 %v965, %v965
        %vm1030 = vcmask 519168
        %1031 = vst.msk [vmem:[%s293] sm:$0xf] %vm1030, %v966
        %1032 = vst.msk [vmem:[%s293 + $0x4] sm:$0xf] %vm1030, %v967
        %1033 = vst.msk [vmem:[%s293 + $0x8] sm:$0xf] %vm1030, %v968
        %1034 = vst.msk [vmem:[%s293 + $0xc] sm:$0xf] %vm1030, %v969
        %1035 = vst.msk [vmem:[%s293 + $0x10] sm:$0xf] %vm1030, %v970
        %1036 = vst.msk [vmem:[%s293 + $0x14] sm:$0xf] %vm1030, %v971
        %1037 = vst.msk [vmem:[%s293 + $0x18] sm:$0xf] %vm1030, %v972
        %1038 = vst.msk [vmem:[%s293 + $0x1c] sm:$0xf] %vm1030, %v973
        %1039 = vst.msk [vmem:[%s293 + $0x20] sm:$0xf] %vm1030, %v974
        %1040 = vst.msk [vmem:[%s293 + $0x24] sm:$0xf] %vm1030, %v975
        %1041 = vst.msk [vmem:[%s293 + $0x28] sm:$0xf] %vm1030, %v976
        %1042 = vst.msk [vmem:[%s293 + $0x2c] sm:$0xf] %vm1030, %v977
        %1043 = vst.msk [vmem:[%s293 + $0x30] sm:$0xf] %vm1030, %v978
        %1044 = vst.msk [vmem:[%s293 + $0x34] sm:$0xf] %vm1030, %v979
        %1045 = vst.msk [vmem:[%s293 + $0x38] sm:$0xf] %vm1030, %v980
        %1046 = vst.msk [vmem:[%s293 + $0x3c] sm:$0xf] %vm1030, %v981
        %1047 = vst.msk [vmem:[%s293 + $0x40] sm:$0xf] %vm1030, %v982
        %1048 = vst.msk [vmem:[%s293 + $0x44] sm:$0xf] %vm1030, %v983
        %1049 = vst.msk [vmem:[%s293 + $0x48] sm:$0xf] %vm1030, %v984
        %1050 = vst.msk [vmem:[%s293 + $0x4c] sm:$0xf] %vm1030, %v985
        %1051 = vst.msk [vmem:[%s293 + $0x50] sm:$0xf] %vm1030, %v986
        %1052 = vst.msk [vmem:[%s293 + $0x54] sm:$0xf] %vm1030, %v987
        %1053 = vst.msk [vmem:[%s293 + $0x58] sm:$0xf] %vm1030, %v988
        %1054 = vst.msk [vmem:[%s293 + $0x5c] sm:$0xf] %vm1030, %v989
        %1055 = vst.msk [vmem:[%s293 + $0x60] sm:$0xf] %vm1030, %v990
        %1056 = vst.msk [vmem:[%s293 + $0x64] sm:$0xf] %vm1030, %v991
        %1057 = vst.msk [vmem:[%s293 + $0x68] sm:$0xf] %vm1030, %v992
        %1058 = vst.msk [vmem:[%s293 + $0x6c] sm:$0xf] %vm1030, %v993
        %1059 = vst.msk [vmem:[%s293 + $0x70] sm:$0xf] %vm1030, %v994
        %1060 = vst.msk [vmem:[%s293 + $0x74] sm:$0xf] %vm1030, %v995
        %1061 = vst.msk [vmem:[%s293 + $0x78] sm:$0xf] %vm1030, %v996
        %1062 = vst.msk [vmem:[%s293 + $0x7c] sm:$0xf] %vm1030, %v997
      $region44: #{tpu_custom_call.1} parent=35 // pred_fallthru
        _
      %s1063 = smul.u32 32, %s20
      %p1064 = scmp.lt.s32.totalorder %s1063, 63
      %s1065 = scalar_select %p1064, %s1063, 63
      %p1066 = scmp.lt.s32.totalorder %s21, 0
      %s1067 = scalar_select %p1066, %s21, 0
      %s1068 = sadd.s32 %s1067, %s1065
      %s1069 = smul.addr %s1068, 4
      %s1070 = scalar_lea.vmem %s4, %s1069
      // Predicated region
      $region45: #{tpu_custom_call.1} parent=35 // pred_check
        %p1071 = pneg %p162
      $region46: #{tpu_custom_call.1} parent=35 // pred_check_branch
        %1073 = sbr.rel (%p1071) target = $region48
      $region47: #{tpu_custom_call.1} parent=35 // pred_region
        %s1074 = smul.u32 32, %s20
      $region48: #{tpu_custom_call.1} parent=35 // pred_fallthru
        _
    $region36: #{tpu_custom_call.1} parent=5 // pred_fallthru
      _
    %p1075 = scmp.le.s32.totalorder 2, %s10
    // Predicated region
    $region49: #{tpu_custom_call.1} parent=5 // pred_check
      %p1076 = pneg %p1075
    $region50: #{tpu_custom_call.1} parent=5 // pred_check_branch
      %1078 = sbr.rel (%p1076) target = $region52
    $region51: #{tpu_custom_call.1} parent=5 // pred_region
      %s1079 = ssub.s32 %s10, 2
      // Predicated region
      $region53: #{tpu_custom_call.1} parent=51 // pred_check
        %p1080 = pneg %p168
      $region54: #{tpu_custom_call.1} parent=51 // pred_check_branch
        %1082 = sbr.rel (%p1080) target = $region56
      $region55: #{tpu_custom_call.1} parent=51 // pred_region
        %s1083 = smul.u32 32, %s23
        %p1084 = scmp.lt.s32.totalorder %s1083, 63
        %s1085 = scalar_select %p1084, %s1083, 63
        %p1086 = scmp.lt.s32.totalorder %s24, 0
        %s1087 = scalar_select %p1086, %s24, 0
        %s1088 = sadd.s32 %s1087, %s1085
        %s1089 = smul.addr %s1088, 4
        %s1090 = scalar_lea.vmem %s4, %s1089
      $region56: #{tpu_custom_call.1} parent=51 // pred_fallthru
        _
    $region52: #{tpu_custom_call.1} parent=5 // pred_fallthru
      _
  $region6: #{tpu_custom_call.1} parent=0 // loop_footer
    %s14 = sadd.s32 1, %s10
  $region7: #{tpu_custom_call.1} parent=0 // loop_footer_branch
    %9 = sbr.rel target = $region3
  $region8: #{tpu_custom_call.1} parent=0 // loop_exit
    _

</llo_original>
